<compile_context>
chip_gen: v5e
topology: v5e:2x2
jax: 0.10.0
libtpu: 0.0.40
codegen_flags: <defaults>
</compile_context>

<pallas_src>
import functools

import jax
import jax.numpy as jnp
from jax.experimental import pallas as pl
from jax.experimental.pallas import tpu as pltpu


def _round_up(x, m):
    return -(-x // m) * m


def _pick_batch_tile(batch):
    """Largest lane-aligned tile; prefer >= 2 grid steps (v7x has 2 TensorCores)."""
    for tile in (512, 256, 128):
        if batch % tile == 0 and batch // tile >= 2:
            return tile
    for tile in (512, 256, 128):
        if batch % tile == 0:
            return tile
    return batch


def _mlp_kernel(x_ref, w_ref, b_ref, o_ref, *, num_linear):
    """Full forward for one batch tile, entirely in VMEM.

    x_ref: [Dp, Bt] f32   features x batch-tile (features zero-padded to Dp)
    w_ref: [L, Dp, Dp]    layer i weight in rows [:out_i], cols [:in_i]; rest zero
    b_ref: [L, Dp, 1] f32 layer i bias in rows [:out_i]; rest zero
    o_ref: [1, Bt]  f32   row 0 of the final layer = the scalar prediction
    """
    h = x_ref[...]                                          # f32 [Dp, Bt]
    for i in range(num_linear):
        w = w_ref[i]                                        # [Dp, Dp] (bf16)
        acc = jnp.dot(w, h.astype(w.dtype),
                      preferred_element_type=jnp.float32)   # MXU, f32 accumulation
        h = acc + b_ref[i]                                  # f32 bias add (per-row)
        if i < num_linear - 1:                              # ReLU on hidden layers only
            h = jnp.maximum(h, 0.0)
    o_ref[...] = h[:1, :]                                   # lane-dense [1, Bt] store


def pack_params(weights, biases, param_dtype=jnp.bfloat16):
    """weights[i]: PyTorch layout [out_i, in_i]; biases[i]: [out_i]. Zero-padded slabs."""
    num_linear = len(weights)
    dims = [weights[0].shape[1]] + [w.shape[0] for w in weights]
    dp = _round_up(max(max(dims), 8), 8)                    # sublane-aligned feature dim
    w_slab = jnp.zeros((num_linear, dp, dp), param_dtype)
    b_slab = jnp.zeros((num_linear, dp, 1), jnp.float32)
    for i, (w, b) in enumerate(zip(weights, biases)):
        o, n = w.shape
        w_slab = w_slab.at[i, :o, :n].set(w.astype(param_dtype))
        b_slab = b_slab.at[i, :o, 0].set(b.astype(jnp.float32))
    return w_slab, b_slab, dp


def inflation_predictor_forward(x, weights, biases, *, batch_tile=None,
                                param_dtype=jnp.bfloat16):
    """x: [batch, input_size] f32. weights[i]: [out_i, in_i] (PyTorch), biases[i]: [out_i]."""
    batch, input_size = x.shape
    num_linear = len(weights)
    if batch_tile is None:
        batch_tile = _pick_batch_tile(batch)
    assert batch % batch_tile == 0

    w_slab, b_slab, dp = pack_params(weights, biases, param_dtype)

    # Batch-on-lanes layout: pad features up to Dp and transpose -> [Dp, batch].
    x_t = jnp.zeros((dp, batch), jnp.float32).at[:input_size, :].set(x.T)

    grid = (batch // batch_tile,)
    kernel = functools.partial(_mlp_kernel, num_linear=num_linear)

    out = pl.pallas_call(
        kernel,
        out_shape=jax.ShapeDtypeStruct((1, batch), jnp.float32),
        grid=grid,
        in_specs=[
            pl.BlockSpec((dp, batch_tile), lambda i: (0, i)),
            # Whole parameter slabs, constant index -> resident across the grid.
            # TODO(synk): for large num_neurons on v7x (64 MiB VMEM), single-buffer
            # these (pipeline_mode) or add a hidden-dim grid axis with an accumulator.
            pl.BlockSpec(w_slab.shape, lambda i: (0, 0, 0)),
            pl.BlockSpec(b_slab.shape, lambda i: (0, 0, 0)),
        ],
        out_specs=pl.BlockSpec((1, batch_tile), lambda i: (0, i)),
        compiler_params=pltpu.CompilerParams(
            dimension_semantics=("parallel",)),
    )(x_t, w_slab, b_slab)

    return out.T                                            # [batch, 1], like nn.Linear(., 1)


def init_params(key, input_size, num_layers, num_neurons):
    """Deterministic synthetic init matching the PyTorch module's layer shapes."""
    dims = [input_size] + [num_neurons] * num_layers + [1]
    weights, biases = [], []
    for i in range(len(dims) - 1):
        key, kw, kb = jax.random.split(key, 3)
        bound = 1.0 / float(dims[i]) ** 0.5
        # PyTorch nn.Linear layout: weight [out, in], bias [out].
        weights.append(jax.random.uniform(
            kw, (dims[i + 1], dims[i]), jnp.float32, -bound, bound))
        biases.append(jax.random.uniform(
            kb, (dims[i + 1],), jnp.float32, -bound, bound))
    return weights, biases


def reference_forward(x, weights, biases, param_dtype=jnp.float32):
    """PyTorch-equivalent forward: h @ W.T + b, ReLU on all but the final layer."""
    h = x
    n = len(weights)
    for i, (w, b) in enumerate(zip(weights, biases)):
        h = jnp.dot(h.astype(param_dtype), w.astype(param_dtype).T,
                    preferred_element_type=jnp.float32) + b
        if i < n - 1:
            h = jnp.maximum(h, 0.0)
    return h


if __name__ == "__main__":
    input_size = 16
    num_layers = 3
    num_neurons = 32
    batch = 256   # lane-dense 128-wide tiles, 2 grid steps (feeds both v7x TCs)

    key = jax.random.PRNGKey(0)
    key, kx = jax.random.split(key)
    x = jax.random.normal(kx, (batch, input_size), jnp.float32)
    weights, biases = init_params(key, input_size, num_layers, num_neurons)

    out = inflation_predictor_forward(x, weights, biases)
    out = jax.block_until_ready(out)
    assert out.shape == (batch, 1)

    # Numerics-matched reference (same bf16 matmul operands, f32 accumulation).
    ref_bf16 = reference_forward(x, weights, biases, param_dtype=jnp.bfloat16)
    assert jnp.allclose(out, ref_bf16, atol=1e-4, rtol=1e-4), "mismatch vs bf16 reference"

    # Full-f32 PyTorch-semantics reference (loose tol: only bf16 quantization differs).
    ref_f32 = reference_forward(x, weights, biases, param_dtype=jnp.float32)
    assert jnp.allclose(out, ref_f32, atol=1e-1, rtol=1e-1), "mismatch vs f32 reference"

    print("KERNEL_OK")
</pallas_src>

<mosaic_0001>
module attributes {stable_mosaic.version = 11 : i64} {
  func.func @_mlp_kernel(%arg0: i32, %arg1: memref<32x128xf32, #tpu.memory_space<vmem>>, %arg2: memref<4x32x32xbf16, #tpu.memory_space<vmem>>, %arg3: memref<4x32x1xf32, #tpu.memory_space<vmem>>, %arg4: memref<1x128xf32, #tpu.memory_space<vmem>>) attributes {dimension_semantics = [#tpu.dimension_semantics<parallel>], iteration_bounds = array<i64: 2>, scalar_prefetch = 0 : i64, scratch_operands = 0 : i64, tpu.core_type = #tpu.core_type<tc>, window_params = [{transform_indices = @transform_0, window_bounds = array<i64: 32, 128>}, {pipeline_mode = #tpu.pipeline_mode<synchronous>, transform_indices = @transform_1, window_bounds = array<i64: 4, 32, 32>}, {pipeline_mode = #tpu.pipeline_mode<synchronous>, transform_indices = @transform_2, window_bounds = array<i64: 4, 32, 1>}, {transform_indices = @transform_3, window_bounds = array<i64: 1, 128>}]} {
    %c0 = arith.constant 0 : index
    %c0_0 = arith.constant 0 : index
    %0 = vector.load %arg1[%c0, %c0_0] : memref<32x128xf32, #tpu.memory_space<vmem>>, vector<32x128xf32>
    %c0_1 = arith.constant 0 : index
    %c0_2 = arith.constant 0 : index
    %c0_3 = arith.constant 0 : index
    %1 = vector.load %arg2[%c0_1, %c0_2, %c0_3] : memref<4x32x32xbf16, #tpu.memory_space<vmem>>, vector<1x32x32xbf16>
    %2 = vector.shape_cast %1 : vector<1x32x32xbf16> to vector<32x32xbf16>
    %3 = arith.truncf %0 : vector<32x128xf32> to vector<32x128xbf16>
    %cst = arith.constant dense<0.000000e+00> : vector<32x128xf32>
    %4 = tpu.matmul %2, %3, %cst {dimension_numbers = #tpu.dot_dimension_numbers<[1], [0], [0], [1], [0, 0, 1, 1], [], []>} : vector<32x32xbf16>, vector<32x128xbf16>, vector<32x128xf32> -> vector<32x128xf32>
    %c0_4 = arith.constant 0 : index
    %c0_5 = arith.constant 0 : index
    %c0_6 = arith.constant 0 : index
    %5 = vector.load %arg3[%c0_4, %c0_5, %c0_6] : memref<4x32x1xf32, #tpu.memory_space<vmem>>, vector<1x32x1xf32>
    %6 = vector.shape_cast %5 : vector<1x32x1xf32> to vector<32x1xf32>
    %7 = vector.broadcast %6 : vector<32x1xf32> to vector<32x128xf32>
    %8 = arith.addf %4, %7 : vector<32x128xf32>
    %cst_7 = arith.constant 0.000000e+00 : f32
    %9 = vector.broadcast %cst_7 : f32 to vector<32x128xf32>
    %10 = arith.maximumf %8, %9 : vector<32x128xf32>
    %c1 = arith.constant 1 : index
    %c0_8 = arith.constant 0 : index
    %c0_9 = arith.constant 0 : index
    %11 = vector.load %arg2[%c1, %c0_8, %c0_9] : memref<4x32x32xbf16, #tpu.memory_space<vmem>>, vector<1x32x32xbf16>
    %12 = vector.shape_cast %11 : vector<1x32x32xbf16> to vector<32x32xbf16>
    %13 = arith.truncf %10 : vector<32x128xf32> to vector<32x128xbf16>
    %cst_10 = arith.constant dense<0.000000e+00> : vector<32x128xf32>
    %14 = tpu.matmul %12, %13, %cst_10 {dimension_numbers = #tpu.dot_dimension_numbers<[1], [0], [0], [1], [0, 0, 1, 1], [], []>} : vector<32x32xbf16>, vector<32x128xbf16>, vector<32x128xf32> -> vector<32x128xf32>
    %c1_11 = arith.constant 1 : index
    %c0_12 = arith.constant 0 : index
    %c0_13 = arith.constant 0 : index
    %15 = vector.load %arg3[%c1_11, %c0_12, %c0_13] : memref<4x32x1xf32, #tpu.memory_space<vmem>>, vector<1x32x1xf32>
    %16 = vector.shape_cast %15 : vector<1x32x1xf32> to vector<32x1xf32>
    %17 = vector.broadcast %16 : vector<32x1xf32> to vector<32x128xf32>
    %18 = arith.addf %14, %17 : vector<32x128xf32>
    %cst_14 = arith.constant 0.000000e+00 : f32
    %19 = vector.broadcast %cst_14 : f32 to vector<32x128xf32>
    %20 = arith.maximumf %18, %19 : vector<32x128xf32>
    %c2 = arith.constant 2 : index
    %c0_15 = arith.constant 0 : index
    %c0_16 = arith.constant 0 : index
    %21 = vector.load %arg2[%c2, %c0_15, %c0_16] : memref<4x32x32xbf16, #tpu.memory_space<vmem>>, vector<1x32x32xbf16>
    %22 = vector.shape_cast %21 : vector<1x32x32xbf16> to vector<32x32xbf16>
    %23 = arith.truncf %20 : vector<32x128xf32> to vector<32x128xbf16>
    %cst_17 = arith.constant dense<0.000000e+00> : vector<32x128xf32>
    %24 = tpu.matmul %22, %23, %cst_17 {dimension_numbers = #tpu.dot_dimension_numbers<[1], [0], [0], [1], [0, 0, 1, 1], [], []>} : vector<32x32xbf16>, vector<32x128xbf16>, vector<32x128xf32> -> vector<32x128xf32>
    %c2_18 = arith.constant 2 : index
    %c0_19 = arith.constant 0 : index
    %c0_20 = arith.constant 0 : index
    %25 = vector.load %arg3[%c2_18, %c0_19, %c0_20] : memref<4x32x1xf32, #tpu.memory_space<vmem>>, vector<1x32x1xf32>
    %26 = vector.shape_cast %25 : vector<1x32x1xf32> to vector<32x1xf32>
    %27 = vector.broadcast %26 : vector<32x1xf32> to vector<32x128xf32>
    %28 = arith.addf %24, %27 : vector<32x128xf32>
    %cst_21 = arith.constant 0.000000e+00 : f32
    %29 = vector.broadcast %cst_21 : f32 to vector<32x128xf32>
    %30 = arith.maximumf %28, %29 : vector<32x128xf32>
    %c3 = arith.constant 3 : index
    %c0_22 = arith.constant 0 : index
    %c0_23 = arith.constant 0 : index
    %31 = vector.load %arg2[%c3, %c0_22, %c0_23] : memref<4x32x32xbf16, #tpu.memory_space<vmem>>, vector<1x32x32xbf16>
    %32 = vector.shape_cast %31 : vector<1x32x32xbf16> to vector<32x32xbf16>
    %33 = arith.truncf %30 : vector<32x128xf32> to vector<32x128xbf16>
    %cst_24 = arith.constant dense<0.000000e+00> : vector<32x128xf32>
    %34 = tpu.matmul %32, %33, %cst_24 {dimension_numbers = #tpu.dot_dimension_numbers<[1], [0], [0], [1], [0, 0, 1, 1], [], []>} : vector<32x32xbf16>, vector<32x128xbf16>, vector<32x128xf32> -> vector<32x128xf32>
    %c3_25 = arith.constant 3 : index
    %c0_26 = arith.constant 0 : index
    %c0_27 = arith.constant 0 : index
    %35 = vector.load %arg3[%c3_25, %c0_26, %c0_27] : memref<4x32x1xf32, #tpu.memory_space<vmem>>, vector<1x32x1xf32>
    %36 = vector.shape_cast %35 : vector<1x32x1xf32> to vector<32x1xf32>
    %37 = vector.broadcast %36 : vector<32x1xf32> to vector<32x128xf32>
    %38 = arith.addf %34, %37 : vector<32x128xf32>
    %39 = vector.extract_strided_slice %38 {offsets = [0, 0], sizes = [1, 128], strides = [1, 1]} : vector<32x128xf32> to vector<1x128xf32>
    %c0_28 = arith.constant 0 : index
    %c0_29 = arith.constant 0 : index
    %40 = vector.load %arg4[%c0_28, %c0_29] : memref<1x128xf32, #tpu.memory_space<vmem>>, vector<1x128xf32>
    tpu.vector_store %arg4[%c0_28, %c0_29], %39 {strides = array<i32>} : memref<1x128xf32, #tpu.memory_space<vmem>>, vector<1x128xf32>,
    return
  }
  func.func @transform_0(%arg0: i32) -> (i32, i32) {
    %c0_i32 = arith.constant 0 : i32
    %c0_i32_0 = arith.constant 0 : i32
    return %c0_i32, %arg0 : i32, i32
  }
  func.func @transform_1(%arg0: i32) -> (i32, i32, i32) {
    %c0_i32 = arith.constant 0 : i32
    %c0_i32_0 = arith.constant 0 : i32
    %c0_i32_1 = arith.constant 0 : i32
    %c0_i32_2 = arith.constant 0 : i32
    return %c0_i32, %c0_i32_0, %c0_i32_1 : i32, i32, i32
  }
  func.func @transform_2(%arg0: i32) -> (i32, i32, i32) {
    %c0_i32 = arith.constant 0 : i32
    %c0_i32_0 = arith.constant 0 : i32
    %c0_i32_1 = arith.constant 0 : i32
    %c0_i32_2 = arith.constant 0 : i32
    return %c0_i32, %c0_i32_0, %c0_i32_1 : i32, i32, i32
  }
  func.func @transform_3(%arg0: i32) -> (i32, i32) {
    %c0_i32 = arith.constant 0 : i32
    %c0_i32_0 = arith.constant 0 : i32
    return %c0_i32, %arg0 : i32, i32
  }
}

</mosaic_0001>

<llo_original>
// kernel: tpu_custom_call.1
$region0: #{tpu_custom_call.1}
  #allocation0 [shape = 'u32[]', space=smem, size = 0x4, offset = 0x4, fixed_abs, tag = 'smem constant byte address 0x4 - core index']
  #allocation1 [shape = 'u32[72,128]{1,0:T(1,128)}', space=vmem, size = 0x9000, scoped, tag = 'internal scratch']
  %s0 = inlined_call_operand.vmem [shape: f32[32,256], index: 0, kind: input, shape index: {}]
  %s1 = inlined_call_operand.vmem [shape: bf16[4,32,32], index: 1, kind: input, shape index: {}]
  %s2 = inlined_call_operand.vmem [shape: f32[4,32,1], index: 2, kind: input, shape index: {}]
  %s3 = inlined_call_operand.hbm [shape: f32[1,256], index: 3, kind: output, shape index: {}]
  %s4 = sld [smem:[#allocation0]]
  $region83: #{tpu_custom_call.1} parent=0
    _
  %s6 = ssub.s32 1, %s4
  %s7 = scalar_select 0, %s6, %s4
  $region1: #{tpu_custom_call.1} parent=0
    #allocation2 [shape = 'u8[32768]{0}', space=vmem, size = 0x8000, scoped, tag = 'input window, operand 0']
    #allocation3 [shape = 'u8[1024]{0}', space=vmem, size = 0x400, scoped, tag = 'output window, operand 0']
    #allocation4 [shape = 's32[2]{0}', space=sflag, size = 0x8, scoped, tag = 'scoped memory for tpu_custom_call.1']
    %8 = vsyncpa [#allocation4], 0
    %s9 = scalar_lea.sflag [#allocation4], 1
    %10 = vsyncpa %s9, 0
    loop: start=0, step=1, limit=4
    $region2: #{tpu_custom_call.1} parent=1 // loop_pre_header
      _
    $region3: #{tpu_custom_call.1} parent=1 // loop_header
      %s12 = sphi 0, %s16
      %p13 = scmp.ge.s32.totalorder %s12, 4
      %s22 = sphi 0, %s24
      %s25 = sphi 0, %s22
      %s26 = sphi 0, %s25
      %s42 = sphi 0, %s26
      %s46 = sphi 0, %s46
      %s48 = sphi 0, %s46
      %s49 = sphi 0, %s48
      %s63 = sphi 0, %s49
      %s67 = sphi 0, %s67
      %s69 = sphi 0, %s67
      %s70 = sphi 0, %s69
      %s84 = sphi 0, %s70
      %s90 = sphi 0, %s92
      %s93 = sphi 0, %s90
      %s94 = sphi 0, %s93
      %s110 = sphi 0, %s94
    $region4: #{tpu_custom_call.1} parent=1 // loop_header_branch
      %15 = sbr.rel (%p13) target = $region8
    $region5: #{tpu_custom_call.1} parent=1 // loop_body
      %s17 = ssub.s32 %s12, 1
      %s18 = ssub.s32 %s12, 2
      %s19 = sadd.s32 %s12, 1
      %s20 = ssub.s32 %s12, %s19
      %p21 = scmp.eq.s32.totalorder %s20, 0
      %s23 = sadd.s32 %s22, 1
      %s24 = scalar_select %p21, %s22, %s23
      %p27 = pneg %p21
      %p28 = scmp.eq.s32.totalorder %s12, 1
      %p29 = por %p27, %p28
      %p30 = scmp.ne.s32.totalorder %s22, %s25
      %p31 = scmp.eq.s32.totalorder %s12, 0
      %p32 = por %p30, %p31
      %p33 = scmp.ne.s32.totalorder %s22, %s25
      %p34 = scmp.eq.s32.totalorder %s17, 1
      %p35 = por %p33, %p34
      %p36 = scmp.ne.s32.totalorder %s25, %s26
      %p37 = scmp.eq.s32.totalorder %s17, 0
      %p38 = por %p36, %p37
      %p39 = scmp.ne.s32.totalorder %s25, %s26
      %p40 = scmp.eq.s32.totalorder %s18, 1
      %p41 = por %p39, %p40
      %p43 = scmp.ne.s32.totalorder %s26, %s42
      %p44 = scmp.eq.s32.totalorder %s18, 0
      %p45 = por %p43, %p44
      %s47 = sadd.s32 %s46, 1
      %p50 = scmp.eq.s32.totalorder %s12, 1
      %p51 = scmp.ne.s32.totalorder %s46, %s48
      %p52 = scmp.eq.s32.totalorder %s12, 0
      %p53 = por %p51, %p52
      %p54 = scmp.ne.s32.totalorder %s46, %s48
      %p55 = scmp.eq.s32.totalorder %s17, 1
      %p56 = por %p54, %p55
      %p57 = scmp.ne.s32.totalorder %s48, %s49
      %p58 = scmp.eq.s32.totalorder %s17, 0
      %p59 = por %p57, %p58
      %p60 = scmp.ne.s32.totalorder %s48, %s49
      %p61 = scmp.eq.s32.totalorder %s18, 1
      %p62 = por %p60, %p61
      %p64 = scmp.ne.s32.totalorder %s49, %s63
      %p65 = scmp.eq.s32.totalorder %s18, 0
      %p66 = por %p64, %p65
      %s68 = sadd.s32 %s67, 1
      %p71 = scmp.eq.s32.totalorder %s12, 1
      %p72 = scmp.ne.s32.totalorder %s67, %s69
      %p73 = scmp.eq.s32.totalorder %s12, 0
      %p74 = por %p72, %p73
      %p75 = scmp.ne.s32.totalorder %s67, %s69
      %p76 = scmp.eq.s32.totalorder %s17, 1
      %p77 = por %p75, %p76
      %p78 = scmp.ne.s32.totalorder %s69, %s70
      %p79 = scmp.eq.s32.totalorder %s17, 0
      %p80 = por %p78, %p79
      %p81 = scmp.ne.s32.totalorder %s69, %s70
      %p82 = scmp.eq.s32.totalorder %s18, 1
      %p83 = por %p81, %p82
      %p85 = scmp.ne.s32.totalorder %s70, %s84
      %p86 = scmp.eq.s32.totalorder %s18, 0
      %p87 = por %p85, %p86
      %s88 = ssub.s32 %s12, %s19
      %p89 = scmp.eq.s32.totalorder %s88, 0
      %s91 = sadd.s32 %s90, 1
      %s92 = scalar_select %p89, %s90, %s91
      %p95 = pneg %p89
      %p96 = scmp.eq.s32.totalorder %s12, 1
      %p97 = por %p95, %p96
      %p98 = scmp.ne.s32.totalorder %s90, %s93
      %p99 = scmp.eq.s32.totalorder %s12, 0
      %p100 = por %p98, %p99
      %p101 = scmp.ne.s32.totalorder %s90, %s93
      %p102 = scmp.eq.s32.totalorder %s17, 1
      %p103 = por %p101, %p102
      %p104 = scmp.ne.s32.totalorder %s93, %s94
      %p105 = scmp.eq.s32.totalorder %s17, 0
      %p106 = por %p104, %p105
      %p107 = scmp.ne.s32.totalorder %s93, %s94
      %p108 = scmp.eq.s32.totalorder %s18, 1
      %p109 = por %p107, %p108
      %p111 = scmp.ne.s32.totalorder %s94, %s110
      %p112 = scmp.eq.s32.totalorder %s18, 0
      %p113 = por %p111, %p112
      %p114 = scmp.le.s32.totalorder 1, %s12
      %p115 = scmp.lt.s32.totalorder %s12, 3
      %p116 = pnand %p114, %p115
      %p117 = pneg %p116
      // Predicated region
      $region9: #{tpu_custom_call.1} parent=5 // pred_check
        _
      $region10: #{tpu_custom_call.1} parent=5 // pred_check_branch
        %119 = sbr.rel (%p116) target = $region12
      $region11: #{tpu_custom_call.1} parent=5 // pred_region
        %s120 = ssub.s32 %s12, 1
        // Predicated region
        $region13: #{tpu_custom_call.1} parent=11 // pred_check
          %p121 = pneg %p59
        $region14: #{tpu_custom_call.1} parent=11 // pred_check_branch
          %123 = sbr.rel (%p121) target = $region16
        $region15: #{tpu_custom_call.1} parent=11 // pred_region
          _
        $region16: #{tpu_custom_call.1} parent=11 // pred_fallthru
          _
        // Predicated region
        $region17: #{tpu_custom_call.1} parent=11 // pred_check
          %p124 = pneg %p80
        $region18: #{tpu_custom_call.1} parent=11 // pred_check_branch
          %126 = sbr.rel (%p124) target = $region20
        $region19: #{tpu_custom_call.1} parent=11 // pred_region
          _
        $region20: #{tpu_custom_call.1} parent=11 // pred_fallthru
          _
      $region12: #{tpu_custom_call.1} parent=5 // pred_fallthru
        _
      %p127 = scmp.lt.s32.totalorder %s12, 2
      // Predicated region
      $region21: #{tpu_custom_call.1} parent=5 // pred_check
        %p128 = pneg %p127
      $region22: #{tpu_custom_call.1} parent=5 // pred_check_branch
        %130 = sbr.rel (%p128) target = $region24
      $region23: #{tpu_custom_call.1} parent=5 // pred_region
        // Predicated region
        $region25: #{tpu_custom_call.1} parent=23 // pred_check
          %p131 = pneg %p32
        $region26: #{tpu_custom_call.1} parent=23 // pred_check_branch
          %133 = sbr.rel (%p131) target = $region28
        $region27: #{tpu_custom_call.1} parent=23 // pred_region
          %s134 = sand.u32 %s22, 1
          %s135 = sand.u32 %s22, 1
          %s136 = smul.addr %s135, 32
          %s137 = scalar_lea.vmem [#allocation2], %s136
          %s138 = smul.addr %s12, 8
          %s139 = scalar_lea.vmem %s0, %s138
          // Predicated region
          $region29: #{tpu_custom_call.1} parent=27 // pred_check
            _
          $region30: #{tpu_custom_call.1} parent=27 // pred_check_branch
            %141 = sbr.rel (0) target = $region32
          $region31: #{tpu_custom_call.1} parent=27 // pred_region
            // Predicated region
            $region33: #{tpu_custom_call.1} parent=31 // pred_check
              _
            $region34: #{tpu_custom_call.1} parent=31 // pred_check_branch
              %143 = sbr.rel (0) target = $region36
            $region35: #{tpu_custom_call.1} parent=31 // pred_region
              // Predicated region
              $region48: #{tpu_custom_call.1} parent=35 // pred_check
                _
              $region49: #{tpu_custom_call.1} parent=35 // pred_check_branch
                %165 = sbr.rel (0) target = $region51
              $region50: #{tpu_custom_call.1} parent=35 // pred_region
                loop: start=0, step=1, limit=1
                $region52: #{tpu_custom_call.1} parent=50 // loop_pre_header
                  _
                $region53: #{tpu_custom_call.1} parent=50 // loop_header
                  %s167 = sphi 0, %s171
                  %p168 = scmp.ge.s32.totalorder %s167, 1
                  %s172 = sphi %s139, %s139
                  %s173 = sphi %s137, %s137
                $region54: #{tpu_custom_call.1} parent=50 // loop_header_branch
                  %170 = sbr.rel (%p168) target = $region58
                $region55: #{tpu_custom_call.1} parent=50 // loop_body
                  %v174 = vld [vmem:[%s172] sm:$0xff]
                  %175 = vst [vmem:[%s173] sm:$0xff] %v174
                  %v176 = vld [vmem:[%s172 + $0x10] sm:$0xff]
                  %177 = vst [vmem:[%s173 + $0x8] sm:$0xff] %v176
                  %v178 = vld [vmem:[%s172 + $0x20] sm:$0xff]
                  %179 = vst [vmem:[%s173 + $0x10] sm:$0xff] %v178
                  %v180 = vld [vmem:[%s172 + $0x30] sm:$0xff]
                  %181 = vst [vmem:[%s173 + $0x18] sm:$0xff] %v180
                $region56: #{tpu_custom_call.1} parent=50 // loop_footer
                  %s171 = sadd.s32 1, %s167
                $region57: #{tpu_custom_call.1} parent=50 // loop_footer_branch
                  %166 = sbr.rel target = $region53
                $region58: #{tpu_custom_call.1} parent=50 // loop_exit
                  _
              $region51: #{tpu_custom_call.1} parent=35 // pred_fallthru
                _
              // Predicated region
              $region59: #{tpu_custom_call.1} parent=35 // pred_check
                _
              $region60: #{tpu_custom_call.1} parent=35 // pred_check_branch
                %183 = sbr.rel target = $region62
              $region61: #{tpu_custom_call.1} parent=35 // pred_region
                _
              $region62: #{tpu_custom_call.1} parent=35 // pred_fallthru
                _
            $region36: #{tpu_custom_call.1} parent=31 // pred_fallthru
              _
            // Predicated region
            $region37: #{tpu_custom_call.1} parent=31 // pred_check
              _
            $region38: #{tpu_custom_call.1} parent=31 // pred_check_branch
              %145 = sbr.rel target = $region40
            $region39: #{tpu_custom_call.1} parent=31 // pred_region
              %s147 = ssub.s32 256, 1
              loop: start=0, step=1, limit=1
              $region41: #{tpu_custom_call.1} parent=39 // loop_pre_header
                _
              $region42: #{tpu_custom_call.1} parent=39 // loop_header
                %s149 = sphi 0, %s153
                %p150 = scmp.ge.s32.totalorder %s149, 1
                %s154 = sphi %s139, %s139
                %s155 = sphi %s137, %s137
              $region43: #{tpu_custom_call.1} parent=39 // loop_header_branch
                %152 = sbr.rel (%p150) target = $region47
              $region44: #{tpu_custom_call.1} parent=39 // loop_body
                %v156 = vld [vmem:[%s154] sm:%s147]
                %157 = vst [vmem:[%s155] sm:%s147] %v156
                %v158 = vld [vmem:[%s154 + $0x10] sm:%s147]
                %159 = vst [vmem:[%s155 + $0x8] sm:%s147] %v158
                %v160 = vld [vmem:[%s154 + $0x20] sm:%s147]
                %161 = vst [vmem:[%s155 + $0x10] sm:%s147] %v160
                %v162 = vld [vmem:[%s154 + $0x30] sm:%s147]
                %163 = vst [vmem:[%s155 + $0x18] sm:%s147] %v162
              $region45: #{tpu_custom_call.1} parent=39 // loop_footer
                %s153 = sadd.s32 1, %s149
              $region46: #{tpu_custom_call.1} parent=39 // loop_footer_branch
                %148 = sbr.rel target = $region42
              $region47: #{tpu_custom_call.1} parent=39 // loop_exit
                _
            $region40: #{tpu_custom_call.1} parent=31 // pred_fallthru
              _
          $region32: #{tpu_custom_call.1} parent=27 // pred_fallthru
            _
          %184 = vnop
        $region28: #{tpu_custom_call.1} parent=23 // pred_fallthru
          _
      $region24: #{tpu_custom_call.1} parent=5 // pred_fallthru
        _
      %p185 = scmp.le.s32.totalorder 1, %s12
      %p186 = scmp.lt.s32.totalorder %s12, 3
      %p187 = pnand %p185, %p186
      %p188 = pneg %p187
      // Predicated region
      $region63: #{tpu_custom_call.1} parent=5 // pred_check
        _
      $region64: #{tpu_custom_call.1} parent=5 // pred_check_branch
        %190 = sbr.rel (%p187) target = $region66
      $region65: #{tpu_custom_call.1} parent=5 // pred_region
        %s191 = ssub.s32 %s12, 1
        %s192 = sand.u32 %s25, 1
        %s193 = sand.u32 %s25, 1
        %s194 = smul.addr %s193, 32
        %s195 = scalar_lea.vmem [#allocation2], %s194
        // Predicated region
        $region67: #{tpu_custom_call.1} parent=65 // pred_check
          %p196 = pneg %p38
        $region68: #{tpu_custom_call.1} parent=65 // pred_check_branch
          %198 = sbr.rel (%p196) target = $region70
        $region69: #{tpu_custom_call.1} parent=65 // pred_region
          _
        $region70: #{tpu_custom_call.1} parent=65 // pred_fallthru
          _
        %s199 = sand.u32 %s25, 1
        %s200 = sand.u32 %s25, 1
        %s201 = smul.addr %s200, 32
        %s202 = scalar_lea.vmem [#allocation2], %s201
        %p203 = pneg %p38
        %p204 = pneg %p35
        %p205 = pneg %p59
        %p206 = pneg %p56
        %p207 = pneg %p80
        %p208 = pneg %p77
        %p209 = pneg %p106
        %p210 = pneg %p103
        %s211 = sand.u32 %s93, 1
        %s212 = scalar_lea.sflag [#allocation4], %s211
        %s213 = sand.u32 %s93, 1
        %s214 = scalar_lea.vmem [#allocation3], %s213
        %v216 = vld [vmem:[%s195] sm:$0xff]
        %v217 = vld [vmem:[%s195 + $0x8] sm:$0xff]
        %v218 = vld [vmem:[%s195 + $0x10] sm:$0xff]
        %v219 = vld [vmem:[%s195 + $0x18] sm:$0xff]
        %v220 = vld [vmem:[%s1] sm:$0xf]
        %v221 = vld [vmem:[%s1 + $0x4] sm:$0xf]
        %v222 = vld [vmem:[%s1 + $0x8] sm:$0xf]
        %v223 = vld [vmem:[%s1 + $0xc] sm:$0xf]
        %v224 = vpack.c.bf16 %v217, %v216
        %v225 = vpack.c.bf16 %v219, %v218
        %v226 = vld [vmem:[%s2] sm:$0xff]
        %v227 = vld [vmem:[%s2 + $0x8] sm:$0xff]
        %v228 = vld [vmem:[%s2 + $0x10] sm:$0xff]
        %v229 = vld [vmem:[%s2 + $0x18] sm:$0xff]
        %231 = vset.pattern.permute.xlu0 0
        %232 = vperm.xlu0 %231, %v226
        %v233 = vpop.permute.xlu0 %232
        %236 = vset.pattern.permute.xlu0 0
        %237 = vperm.xlu0 %236, %v227
        %v238 = vpop.permute.xlu0 %237
        %241 = vset.pattern.permute.xlu0 0
        %242 = vperm.xlu0 %241, %v228
        %v243 = vpop.permute.xlu0 %242
        %246 = vset.pattern.permute.xlu0 0
        %247 = vperm.xlu0 %246, %v229
        %v248 = vpop.permute.xlu0 %247
        %v254 = vunpack.c.l.b16 %v220
        %v255 = vunpack.c.l.b16 %v221
        %v256 = vunpack.c.l.b16 %v222
        %v257 = vunpack.c.l.b16 %v223
        %v258 = vpack.c.b16 %v255, %v254
        %v259 = vpack.c.b16 %v257, %v256
        %vm260 = vcmask 261120
        %v262 = vsel %vm260, %v258, 0
        %v265 = vsel %vm260, %v259, 0
        %267 = vmatpush.bf16.msra.mxu0 0
        %268 = vmatpush.bf16.msra.mxu0 0
        %269 = vmatpush.bf16.msra.mxu0 0
        %270 = vmatpush.bf16.msra.mxu0 0
        %271 = vmatpush.bf16.msra.mxu0 0
        %272 = vmatpush.bf16.msra.mxu0 0
        %273 = vmatpush.bf16.msra.mxu0 %v225
        %274 = vmatpush.bf16.msra.mxu0 %v224
        %275 = vmatmul.bf16.gmra.mxu0 %v262
        %v276 = vpop.f32.mrf.mxu0
        %v277 = vadd.f32 %v233, %v276
        %v278 = vpop.f32.mrf.mxu0
        %v279 = vadd.f32 %v238, %v278
        %280 = vmatmul.bf16.gmra.mxu0 %v265
        %v281 = vpop.f32.mrf.mxu0
        %v282 = vadd.f32 %v243, %v281
        %v283 = vpop.f32.mrf.mxu0
        %v284 = vadd.f32 %v248, %v283
        %285 = vdwg.mxu0
        %v286 = vmax.f32 %v277, 0.0
        %v287 = vmax.f32 %v279, 0.0
        %v288 = vmax.f32 %v282, 0.0
        %v289 = vmax.f32 %v284, 0.0
        %s290 = scalar_lea.vmem %s1, 16
        %v291 = vld [vmem:[%s290] sm:$0xf]
        %v292 = vld [vmem:[%s290 + $0x4] sm:$0xf]
        %v293 = vld [vmem:[%s290 + $0x8] sm:$0xf]
        %v294 = vld [vmem:[%s290 + $0xc] sm:$0xf]
        %v295 = vpack.c.bf16 %v287, %v286
        %v296 = vpack.c.bf16 %v289, %v288
        %s297 = scalar_lea.vmem %s2, 32
        %v298 = vld [vmem:[%s297] sm:$0xff]
        %v299 = vld [vmem:[%s297 + $0x8] sm:$0xff]
        %v300 = vld [vmem:[%s297 + $0x10] sm:$0xff]
        %v301 = vld [vmem:[%s297 + $0x18] sm:$0xff]
        %303 = vset.pattern.permute.xlu0 0
        %304 = vperm.xlu0 %303, %v298
        %v305 = vpop.permute.xlu0 %304
        %308 = vset.pattern.permute.xlu0 0
        %309 = vperm.xlu0 %308, %v299
        %v310 = vpop.permute.xlu0 %309
        %313 = vset.pattern.permute.xlu0 0
        %314 = vperm.xlu0 %313, %v300
        %v315 = vpop.permute.xlu0 %314
        %318 = vset.pattern.permute.xlu0 0
        %319 = vperm.xlu0 %318, %v301
        %v320 = vpop.permute.xlu0 %319
        %v326 = vunpack.c.l.b16 %v291
        %v327 = vunpack.c.l.b16 %v292
        %v328 = vunpack.c.l.b16 %v293
        %v329 = vunpack.c.l.b16 %v294
        %v330 = vpack.c.b16 %v327, %v326
        %v331 = vpack.c.b16 %v329, %v328
        %v333 = vsel %vm260, %v330, 0
        %v336 = vsel %vm260, %v331, 0
        %338 = vmatpush.bf16.msra.mxu0 0
        %339 = vmatpush.bf16.msra.mxu0 0
        %340 = vmatpush.bf16.msra.mxu0 0
        %341 = vmatpush.bf16.msra.mxu0 0
        %342 = vmatpush.bf16.msra.mxu0 0
        %343 = vmatpush.bf16.msra.mxu0 0
        %344 = vmatpush.bf16.msra.mxu0 %v296
        %345 = vmatpush.bf16.msra.mxu0 %v295
        %346 = vmatmul.bf16.gmra.mxu0 %v333
        %v347 = vpop.f32.mrf.mxu0
        %v348 = vadd.f32 %v305, %v347
        %v349 = vpop.f32.mrf.mxu0
        %v350 = vadd.f32 %v310, %v349
        %351 = vmatmul.bf16.gmra.mxu0 %v336
        %v352 = vpop.f32.mrf.mxu0
        %v353 = vadd.f32 %v315, %v352
        %v354 = vpop.f32.mrf.mxu0
        %v355 = vadd.f32 %v320, %v354
        %356 = vdwg.mxu0
        %v357 = vmax.f32 %v348, 0.0
        %v358 = vmax.f32 %v350, 0.0
        %v359 = vmax.f32 %v353, 0.0
        %v360 = vmax.f32 %v355, 0.0
        %s361 = scalar_lea.vmem %s1, 32
        %v362 = vld [vmem:[%s361] sm:$0xf]
        %v363 = vld [vmem:[%s361 + $0x4] sm:$0xf]
        %v364 = vld [vmem:[%s361 + $0x8] sm:$0xf]
        %v365 = vld [vmem:[%s361 + $0xc] sm:$0xf]
        %v366 = vpack.c.bf16 %v358, %v357
        %v367 = vpack.c.bf16 %v360, %v359
        %s368 = scalar_lea.vmem %s2, 64
        %v369 = vld [vmem:[%s368] sm:$0xff]
        %v370 = vld [vmem:[%s368 + $0x8] sm:$0xff]
        %v371 = vld [vmem:[%s368 + $0x10] sm:$0xff]
        %v372 = vld [vmem:[%s368 + $0x18] sm:$0xff]
        %374 = vset.pattern.permute.xlu0 0
        %375 = vperm.xlu0 %374, %v369
        %v376 = vpop.permute.xlu0 %375
        %379 = vset.pattern.permute.xlu0 0
        %380 = vperm.xlu0 %379, %v370
        %v381 = vpop.permute.xlu0 %380
        %384 = vset.pattern.permute.xlu0 0
        %385 = vperm.xlu0 %384, %v371
        %v386 = vpop.permute.xlu0 %385
        %389 = vset.pattern.permute.xlu0 0
        %390 = vperm.xlu0 %389, %v372
        %v391 = vpop.permute.xlu0 %390
        %v397 = vunpack.c.l.b16 %v362
        %v398 = vunpack.c.l.b16 %v363
        %v399 = vunpack.c.l.b16 %v364
        %v400 = vunpack.c.l.b16 %v365
        %v401 = vpack.c.b16 %v398, %v397
        %v402 = vpack.c.b16 %v400, %v399
        %v404 = vsel %vm260, %v401, 0
        %v407 = vsel %vm260, %v402, 0
        %409 = vmatpush.bf16.msra.mxu0 0
        %410 = vmatpush.bf16.msra.mxu0 0
        %411 = vmatpush.bf16.msra.mxu0 0
        %412 = vmatpush.bf16.msra.mxu0 0
        %413 = vmatpush.bf16.msra.mxu0 0
        %414 = vmatpush.bf16.msra.mxu0 0
        %415 = vmatpush.bf16.msra.mxu0 %v367
        %416 = vmatpush.bf16.msra.mxu0 %v366
        %417 = vmatmul.bf16.gmra.mxu0 %v404
        %v418 = vpop.f32.mrf.mxu0
        %v419 = vadd.f32 %v376, %v418
        %v420 = vpop.f32.mrf.mxu0
        %v421 = vadd.f32 %v381, %v420
        %422 = vmatmul.bf16.gmra.mxu0 %v407
        %v423 = vpop.f32.mrf.mxu0
        %v424 = vadd.f32 %v386, %v423
        %v425 = vpop.f32.mrf.mxu0
        %v426 = vadd.f32 %v391, %v425
        %427 = vdwg.mxu0
        %v428 = vmax.f32 %v419, 0.0
        %v429 = vmax.f32 %v421, 0.0
        %v430 = vmax.f32 %v424, 0.0
        %v431 = vmax.f32 %v426, 0.0
        %s432 = scalar_lea.vmem %s1, 48
        %v433 = vld [vmem:[%s432] sm:$0xf]
        %v434 = vld [vmem:[%s432 + $0x4] sm:$0xf]
        %v435 = vld [vmem:[%s432 + $0x8] sm:$0xf]
        %v436 = vld [vmem:[%s432 + $0xc] sm:$0xf]
        %v437 = vpack.c.bf16 %v429, %v428
        %v438 = vpack.c.bf16 %v431, %v430
        %s439 = scalar_lea.vmem %s2, 96
        %v440 = vld [vmem:[%s439] sm:$0xff]
        %v441 = vld [vmem:[%s439 + $0x8] sm:$0xff]
        %v442 = vld [vmem:[%s439 + $0x10] sm:$0xff]
        %v443 = vld [vmem:[%s439 + $0x18] sm:$0xff]
        %445 = vset.pattern.permute.xlu0 0
        %446 = vperm.xlu0 %445, %v440
        %v447 = vpop.permute.xlu0 %446
        %450 = vset.pattern.permute.xlu0 0
        %451 = vperm.xlu0 %450, %v441
        %v452 = vpop.permute.xlu0 %451
        %454 = vset.pattern.permute.xlu0 0
        %455 = vperm.xlu0 %454, %v442
        %v456 = vpop.permute.xlu0 %455
        %458 = vset.pattern.permute.xlu0 0
        %459 = vperm.xlu0 %458, %v443
        %v460 = vpop.permute.xlu0 %459
        %v465 = vunpack.c.l.b16 %v433
        %v466 = vunpack.c.l.b16 %v434
        %v467 = vunpack.c.l.b16 %v435
        %v468 = vunpack.c.l.b16 %v436
        %v469 = vpack.c.b16 %v466, %v465
        %v470 = vpack.c.b16 %v468, %v467
        %v472 = vsel %vm260, %v469, 0
        %v475 = vsel %vm260, %v470, 0
        %477 = vmatpush.bf16.msra.mxu0 0
        %478 = vmatpush.bf16.msra.mxu0 0
        %479 = vmatpush.bf16.msra.mxu0 0
        %480 = vmatpush.bf16.msra.mxu0 0
        %481 = vmatpush.bf16.msra.mxu0 0
        %482 = vmatpush.bf16.msra.mxu0 0
        %483 = vmatpush.bf16.msra.mxu0 %v438
        %484 = vmatpush.bf16.msra.mxu0 %v437
        %485 = vmatmul.bf16.gmra.mxu0 %v472
        %v486 = vpop.f32.mrf.mxu0
        %v487 = vadd.f32 %v447, %v486
        %v488 = vpop.f32.mrf.mxu0
        %489 = vmatmul.bf16.gmra.mxu0 %v475
        %v490 = vpop.f32.mrf.mxu0
        %v491 = vpop.f32.mrf.mxu0
        %492 = vdwg.mxu0
        %493 = vst [vmem:[%s214] sm:$0x1] %v487
        %s494 = sand.u32 %s93, 1
        %s495 = scalar_lea.sflag [#allocation4], %s494
        %s496 = sand.u32 %s93, 1
        %s497 = scalar_lea.vmem [#allocation3], %s496
        // Predicated region
        $region71: #{tpu_custom_call.1} parent=65 // pred_check
          %p498 = pneg %p103
        $region72: #{tpu_custom_call.1} parent=65 // pred_check_branch
          %500 = sbr.rel (%p498) target = $region74
        $region73: #{tpu_custom_call.1} parent=65 // pred_region
          %502 = vsyncadd %s495, 0
          %s503 = scalar_lea.hbm %s3, %s17
          %s505 = sshll.u32 %s497, 4
          %s506 = int_to_ptr.vmem [resolvable:$true] %s505
          %s507 = sshll.u32 %s503, 4
          %s508 = int_to_ptr.hbm [resolvable:$true] %s507
          %510 = dma.vmem_to_hbm [thread:$0]  %s506, 16, %s508, %s495
        $region74: #{tpu_custom_call.1} parent=65 // pred_fallthru
          _
      $region66: #{tpu_custom_call.1} parent=5 // pred_fallthru
        _
      %p511 = scmp.le.s32.totalorder 2, %s12
      // Predicated region
      $region75: #{tpu_custom_call.1} parent=5 // pred_check
        %p512 = pneg %p511
      $region76: #{tpu_custom_call.1} parent=5 // pred_check_branch
        %514 = sbr.rel (%p512) target = $region78
      $region77: #{tpu_custom_call.1} parent=5 // pred_region
        %s515 = ssub.s32 %s12, 2
        // Predicated region
        $region79: #{tpu_custom_call.1} parent=77 // pred_check
          %p516 = pneg %p109
        $region80: #{tpu_custom_call.1} parent=77 // pred_check_branch
          %518 = sbr.rel (%p516) target = $region82
        $region81: #{tpu_custom_call.1} parent=77 // pred_region
          %s519 = sand.u32 %s94, 1
          %s520 = scalar_lea.sflag [#allocation4], %s519
          %s521 = sand.u32 %s94, 1
          %s522 = scalar_lea.vmem [#allocation3], %s521
          %524 = dma.done %s520, 16
        $region82: #{tpu_custom_call.1} parent=77 // pred_fallthru
          _
      $region78: #{tpu_custom_call.1} parent=5 // pred_fallthru
        _
    $region6: #{tpu_custom_call.1} parent=1 // loop_footer
      %s16 = sadd.s32 1, %s12
    $region7: #{tpu_custom_call.1} parent=1 // loop_footer_branch
      %11 = sbr.rel target = $region3
    $region8: #{tpu_custom_call.1} parent=1 // loop_exit
      _
    %525 = vsyncpa [#allocation4], 1
    %s526 = scalar_lea.sflag [#allocation4], 1
    %527 = vsyncpa %s526, 1

</llo_original>
